<compile_context>
chip_gen: v6e
topology: v6e:2x2x1
jax: 0.10.0
libtpu: 0.0.40
codegen_flags: <defaults>
</compile_context>

<pallas_src>
import functools

import jax
import jax.numpy as jnp
from jax.experimental import pallas as pl
from jax.experimental.pallas import tpu as pltpu

BN_EPS = 1e-5
VMEM_LIMIT_BYTES = 32 * 1024 * 1024  # explicit scoped-VMEM budget (portable v5e/v6e/v7x)


def _round_up(x, m):
    return (x + m - 1) // m * m


# ----------------------------------------------------------------------------- kernels
def conv_stats_kernel(p_ref, w_ref, y_ref, sum_ref, ssq_ref):
    """Pass 1 of conv+BN: transposed im2col GEMM + per-channel sum / sum-of-squares.

    p_ref:   (K_pad, TR)      bf16 patch tile (lanes = output positions -> lane dense)
    w_ref:   (Cout_p, K_pad)  bf16 weight, resident across the whole grid
    y_ref:   (Cout_p, TR)     f32 raw conv output tile
    sum_ref: (Cout_p, 1)      f32 accumulator (same block every grid step)
    ssq_ref: (Cout_p, 1)      f32 accumulator
    """
    @pl.when(pl.program_id(0) == 0)
    def _init():
        sum_ref[...] = jnp.zeros_like(sum_ref)
        ssq_ref[...] = jnp.zeros_like(ssq_ref)

    y = jnp.dot(w_ref[...], p_ref[...], preferred_element_type=jnp.float32)
    y_ref[...] = y
    # Zero-padded K rows / R columns / Cout rows contribute exactly 0 -> no masking.
    sum_ref[...] += jnp.sum(y, axis=1, keepdims=True)
    ssq_ref[...] += jnp.sum(y * y, axis=1, keepdims=True)


def bn_relu_kernel(y_ref, sum_ref, ssq_ref, g_ref, b_ref, o_ref, *, count):
    """Pass 2: folded BatchNorm (training-mode batch stats) affine + ReLU, bf16 out."""
    inv_n = 1.0 / count
    mean = sum_ref[...] * inv_n                               # (Cout_p, 1)
    var = ssq_ref[...] * inv_n - mean * mean                  # biased variance (train mode)
    scale = g_ref[...] * jax.lax.rsqrt(var + BN_EPS)
    shift = b_ref[...] - mean * scale
    o_ref[...] = jnp.maximum(y_ref[...] * scale + shift, 0.0).astype(o_ref.dtype)


def heads_kernel(x_ref, w_ref, b_ref, o_ref):
    """Fused fc_mu / fc_logvar: single GEMM accumulated over the feature-dim grid axis."""
    @pl.when(pl.program_id(0) == 0)
    def _init():
        o_ref[...] = jnp.broadcast_to(b_ref[...], o_ref.shape)
    o_ref[...] += jnp.dot(x_ref[...], w_ref[...], preferred_element_type=jnp.float32)


# -------------------------------------------------------------------------------- glue
def _im2col_cf(act, k, s, p):
    """Patch extraction from a channel-major activation.

    act: (C, B, H, W).  Returns patches (K, R) with K = k*k*C rows ordered (kh, kw, c)
    and R = B*Ho*Wo columns ordered (b, ho, wo), plus (Ho, Wo).  No layout transpose of
    the (C, B, H, W) block is needed in this orientation.
    """
    C, B, H, W = act.shape
    xp = jnp.pad(act, ((0, 0), (0, 0), (p, p), (p, p)))
    Ho = (H + 2 * p - k) // s + 1
    Wo = (W + 2 * p - k) // s + 1
    cols = []
    for ki in range(k):
        for kj in range(k):
            cols.append(xp[:, :, ki:ki + s * Ho:s, kj:kj + s * Wo:s])  # (C, B, Ho, Wo)
    pat = jnp.stack(cols, axis=0)                                       # (k*k, C, B, Ho, Wo)
    return pat.reshape(k * k * C, B * Ho * Wo), Ho, Wo


def conv_bn_relu(act, w_t, gamma, beta, cout, *, k, s, p):
    """One encoder block on channel-major activations: Conv2d(k,s,p) + BN(train) + ReLU.

    act: (Cin, B, H, W) bf16.  w_t: (Cout_p, K_pad) bf16 (pre-transposed / pre-padded).
    Returns (Cout, B, Ho, Wo) bf16.
    """
    _, B, _, _ = act.shape
    cout_p, k_pad = w_t.shape
    patches, Ho, Wo = _im2col_cf(act, k, s, p)
    K, R = patches.shape
    TR = min(512, _round_up(R, 128))          # lane tile, multiple of 128
    R_pad = _round_up(R, TR)
    n_tiles = R_pad // TR
    patches = jnp.pad(patches, ((0, k_pad - K), (0, R_pad - R)))

    cost = pl.CostEstimate(
        flops=int(2 * cout_p * k_pad * R_pad),
        transcendentals=0,
        bytes_accessed=int(k_pad * R_pad * 2 + cout_p * k_pad * 2 + cout_p * R_pad * 4),
    )

    y, ch_sum, ch_ssq = pl.pallas_call(
        conv_stats_kernel,
        out_shape=(
            jax.ShapeDtypeStruct((cout_p, R_pad), jnp.float32),
            jax.ShapeDtypeStruct((cout_p, 1), jnp.float32),
            jax.ShapeDtypeStruct((cout_p, 1), jnp.float32),
        ),
        grid=(n_tiles,),
        in_specs=[
            pl.BlockSpec((k_pad, TR), lambda j: (0, j)),
            pl.BlockSpec((cout_p, k_pad), lambda j: (0, 0)),
        ],
        out_specs=(
            pl.BlockSpec((cout_p, TR), lambda j: (0, j)),
            pl.BlockSpec((cout_p, 1), lambda j: (0, 0)),
            pl.BlockSpec((cout_p, 1), lambda j: (0, 0)),
        ),
        compiler_params=pltpu.CompilerParams(
            dimension_semantics=("arbitrary",),   # BN-stats accumulation axis
            vmem_limit_bytes=VMEM_LIMIT_BYTES),
        cost_estimate=cost,
    )(patches, w_t)

    out = pl.pallas_call(
        functools.partial(bn_relu_kernel, count=float(R)),
        out_shape=jax.ShapeDtypeStruct((cout_p, R_pad), jnp.bfloat16),
        grid=(n_tiles,),
        in_specs=[
            pl.BlockSpec((cout_p, TR), lambda j: (0, j)),
            pl.BlockSpec((cout_p, 1), lambda j: (0, 0)),
            pl.BlockSpec((cout_p, 1), lambda j: (0, 0)),
            pl.BlockSpec((cout_p, 1), lambda j: (0, 0)),
            pl.BlockSpec((cout_p, 1), lambda j: (0, 0)),
        ],
        out_specs=pl.BlockSpec((cout_p, TR), lambda j: (0, j)),
        compiler_params=pltpu.CompilerParams(
            dimension_semantics=("parallel",),    # independent row tiles
            vmem_limit_bytes=VMEM_LIMIT_BYTES),
    )(y, ch_sum, ch_ssq, gamma, beta)

    # Drop channel / row padding; columns are (b, ho, wo) -> next layer's channel-major layout.
    return out[:cout, :R].reshape(cout, B, Ho, Wo)


def fc_heads(x_flat, w_heads, b_heads):
    """mu / logvar heads as one fused GEMM, tiled over the (padded) feature dim."""
    B, D = x_flat.shape
    d_pad, c2 = w_heads.shape
    cap = c2 // 2
    td = 512 if d_pad % 512 == 0 else (256 if d_pad % 256 == 0 else 128)
    x_p = jnp.pad(x_flat.astype(jnp.bfloat16), ((0, 0), (0, d_pad - D)))

    out = pl.pallas_call(
        heads_kernel,
        out_shape=jax.ShapeDtypeStruct((B, c2), jnp.float32),
        grid=(d_pad // td,),
        in_specs=[
            pl.BlockSpec((B, td), lambda kk: (0, kk)),
            pl.BlockSpec((td, c2), lambda kk: (kk, 0)),
            pl.BlockSpec((1, c2), lambda kk: (0, 0)),
        ],
        out_specs=pl.BlockSpec((B, c2), lambda kk: (0, 0)),
        compiler_params=pltpu.CompilerParams(
            dimension_semantics=("arbitrary",),
            vmem_limit_bytes=VMEM_LIMIT_BYTES),
    )(x_p, w_heads, b_heads)
    return out[:, :cap], out[:, cap:]


# --------------------------------------------------------------------------- Encoder
def init_encoder_params(key, hdim, capacity, window_dim, kernel_size=4, stride=2, padding=1):
    """Synthetic params, pre-packed into kernel layouts (all layout work hoisted here)."""
    n_layers = len(hdim) - 1
    params = {"convs": []}
    h = w_sp = window_dim
    for i in range(n_layers):
        key, kw = jax.random.split(key)
        cin, cout = hdim[i], hdim[i + 1]
        w = 0.1 * jax.random.normal(kw, (cout, cin, kernel_size, kernel_size), jnp.float32)
        # NOTE: the Conv2d bias is exactly cancelled by training-mode BatchNorm's mean
        # subtraction, so it is omitted from the kernel path (mathematically identical).
        kdim = kernel_size * kernel_size * cin
        k_pad = _round_up(kdim, 128)
        cout_p = _round_up(cout, 8)
        # (Cout, Cin, kh, kw) -> (Cout, kh, kw, Cin) -> (Cout, k*k*Cin): cols (kh, kw, ci),
        # matching the patch row order produced by _im2col_cf.
        w_t = jnp.transpose(w, (0, 2, 3, 1)).reshape(cout, kdim)
        w_t = jnp.pad(w_t, ((0, cout_p - cout), (0, k_pad - kdim))).astype(jnp.bfloat16)
        gamma = jnp.pad(jnp.ones((cout, 1), jnp.float32), ((0, cout_p - cout), (0, 0)))
        beta = jnp.zeros((cout_p, 1), jnp.float32)
        params["convs"].append({"w_t": w_t, "gamma": gamma, "beta": beta})
        h = (h + 2 * padding - kernel_size) // stride + 1
        w_sp = (w_sp + 2 * padding - kernel_size) // stride + 1

    # Actual flatten size of the conv stack.  (The PyTorch module's formula
    # int(window_dim/(len(hdim)-1)**2)**2 * hdim[-1] agrees with this only for
    # self-consistent configs such as the one used here.)
    latent_in_dim = hdim[-1] * h * w_sp
    d_pad = _round_up(latent_in_dim, 128)
    key, k1, k2, k3, k4 = jax.random.split(key, 5)
    w_mu = 0.05 * jax.random.normal(k1, (latent_in_dim, capacity), jnp.float32)
    w_lv = 0.05 * jax.random.normal(k3, (latent_in_dim, capacity), jnp.float32)
    b_mu = 0.05 * jax.random.normal(k2, (capacity,), jnp.float32)
    b_lv = 0.05 * jax.random.normal(k4, (capacity,), jnp.float32)
    w_heads = jnp.concatenate([w_mu, w_lv], axis=1)                       # fused (D, 2*cap)
    params["w_heads"] = jnp.pad(
        w_heads, ((0, d_pad - latent_in_dim), (0, 0))).astype(jnp.bfloat16)
    params["b_heads"] = jnp.concatenate([b_mu, b_lv]).reshape(1, 2 * capacity)
    return params


@functools.partial(jax.jit, static_argnames=("hdim", "kernel_size", "stride", "padding"))
def encoder_forward(params, x, hdim, kernel_size=4, stride=2, padding=1):
    # TODO(synk): extra_layer=True and alt_model=True branches of __init__ are not
    # exercised by the default forward path and are not implemented here.
    # x is NCHW (PyTorch layout); move channels to the front once -> (C, B, H, W) bf16
    # and keep this channel-major layout between layers (no per-layer transposes).
    act = jnp.transpose(x, (1, 0, 2, 3)).astype(jnp.bfloat16)
    for i, layer in enumerate(params["convs"]):
        act = conv_bn_relu(act, layer["w_t"], layer["gamma"], layer["beta"], hdim[i + 1],
                           k=kernel_size, s=stride, p=padding)
    C, B, Ho, Wo = act.shape
    # PyTorch x.view(B, -1) on NCHW flattens per sample in (c, h, w) order.
    x_flat = jnp.transpose(act, (1, 0, 2, 3)).reshape(B, C * Ho * Wo)
    return fc_heads(x_flat, params["w_heads"], params["b_heads"])


if __name__ == "__main__":
    # Small self-consistent config: 2 conv blocks, each halving spatial dims, so the
    # flatten size (16 ch * 4 * 4 = 256) matches the module's latent_in_dim formula.
    batch, window_dim = 2, 16
    hdim = (4, 8, 16)
    capacity = 8

    key = jax.random.PRNGKey(0)
    key, kx = jax.random.split(key)
    x = jax.random.normal(kx, (batch, hdim[0], window_dim, window_dim), jnp.float32)

    params = init_encoder_params(key, hdim, capacity, window_dim)

    mu, logvar = encoder_forward(params, x, hdim=hdim)
    jax.block_until_ready((mu, logvar))

    assert mu.shape == (batch, capacity) and logvar.shape == (batch, capacity)
    assert mu.dtype == jnp.float32 and logvar.dtype == jnp.float32
    assert bool(jnp.all(jnp.isfinite(mu))) and bool(jnp.all(jnp.isfinite(logvar)))
    print("KERNEL_OK")
</pallas_src>

<mosaic_0001>
module attributes {stable_mosaic.version = 11 : i64} {
  func.func @conv_stats_kernel(%arg0: i32, %arg1: memref<128x128xbf16, #tpu.memory_space<vmem>>, %arg2: memref<8x128xbf16, #tpu.memory_space<vmem>>, %arg3: memref<8x128xf32, #tpu.memory_space<vmem>>, %arg4: memref<8x1xf32, #tpu.memory_space<vmem>>, %arg5: memref<8x1xf32, #tpu.memory_space<vmem>>) attributes {dimension_semantics = [#tpu.dimension_semantics<arbitrary>], iteration_bounds = array<i64: 1>, scalar_prefetch = 0 : i64, scratch_operands = 0 : i64, tpu.core_type = #tpu.core_type<tc>, window_params = [{transform_indices = @transform_0, window_bounds = array<i64: 128, 128>}, {pipeline_mode = #tpu.pipeline_mode<synchronous>, transform_indices = @transform_1, window_bounds = array<i64: 8, 128>}, {transform_indices = @transform_2, window_bounds = array<i64: 8, 128>}, {pipeline_mode = #tpu.pipeline_mode<synchronous>, transform_indices = @transform_3, window_bounds = array<i64: 8, 1>}, {pipeline_mode = #tpu.pipeline_mode<synchronous>, transform_indices = @transform_4, window_bounds = array<i64: 8, 1>}]} {
    %c0_i32 = arith.constant 0 : i32
    %0 = arith.cmpi eq, %arg0, %c0_i32 : i32
    %1 = arith.extui %0 : i1 to i32
    %c0_i32_0 = arith.constant 0 : i32
    %2 = arith.cmpi ne, %1, %c0_i32_0 : i32
    scf.if %2 {
      %cst_16 = arith.constant 0.000000e+00 : f32
      %18 = vector.broadcast %cst_16 : f32 to vector<8x1xf32>
      %c0_17 = arith.constant 0 : index
      %c0_18 = arith.constant 0 : index
      %19 = vector.load %arg4[%c0_17, %c0_18] : memref<8x1xf32, #tpu.memory_space<vmem>>, vector<8x1xf32>
      tpu.vector_store %arg4[%c0_17, %c0_18], %18 {strides = array<i32>} : memref<8x1xf32, #tpu.memory_space<vmem>>, vector<8x1xf32>,
      %cst_19 = arith.constant 0.000000e+00 : f32
      %20 = vector.broadcast %cst_19 : f32 to vector<8x1xf32>
      %c0_20 = arith.constant 0 : index
      %c0_21 = arith.constant 0 : index
      %21 = vector.load %arg5[%c0_20, %c0_21] : memref<8x1xf32, #tpu.memory_space<vmem>>, vector<8x1xf32>
      tpu.vector_store %arg5[%c0_20, %c0_21], %20 {strides = array<i32>} : memref<8x1xf32, #tpu.memory_space<vmem>>, vector<8x1xf32>,
    } else {
    }
    %c0 = arith.constant 0 : index
    %c0_1 = arith.constant 0 : index
    %3 = vector.load %arg2[%c0, %c0_1] : memref<8x128xbf16, #tpu.memory_space<vmem>>, vector<8x128xbf16>
    %c0_2 = arith.constant 0 : index
    %c0_3 = arith.constant 0 : index
    %4 = vector.load %arg1[%c0_2, %c0_3] : memref<128x128xbf16, #tpu.memory_space<vmem>>, vector<128x128xbf16>
    %cst = arith.constant dense<0.000000e+00> : vector<8x128xf32>
    %5 = tpu.matmul %3, %4, %cst {dimension_numbers = #tpu.dot_dimension_numbers<[1], [0], [0], [1], [0, 0, 1, 1], [], []>} : vector<8x128xbf16>, vector<128x128xbf16>, vector<8x128xf32> -> vector<8x128xf32>
    %c0_4 = arith.constant 0 : index
    %c0_5 = arith.constant 0 : index
    %6 = vector.load %arg3[%c0_4, %c0_5] : memref<8x128xf32, #tpu.memory_space<vmem>>, vector<8x128xf32>
    tpu.vector_store %arg3[%c0_4, %c0_5], %5 {strides = array<i32>} : memref<8x128xf32, #tpu.memory_space<vmem>>, vector<8x128xf32>,
    %c0_6 = arith.constant 0 : index
    %c0_7 = arith.constant 0 : index
    %7 = vector.load %arg4[%c0_6, %c0_7] : memref<8x1xf32, #tpu.memory_space<vmem>>, vector<8x1xf32>
    %cst_8 = arith.constant dense<0.000000e+00> : vector<8xf32>
    %8 = vector.multi_reduction <add>, %5, %cst_8 [1] : vector<8x128xf32> to vector<8xf32>
    %9 = vector.shape_cast %8 : vector<8xf32> to vector<8x1xf32>
    %10 = arith.addf %7, %9 : vector<8x1xf32>
    %c0_9 = arith.constant 0 : index
    %c0_10 = arith.constant 0 : index
    %11 = vector.load %arg4[%c0_9, %c0_10] : memref<8x1xf32, #tpu.memory_space<vmem>>, vector<8x1xf32>
    tpu.vector_store %arg4[%c0_9, %c0_10], %10 {strides = array<i32>} : memref<8x1xf32, #tpu.memory_space<vmem>>, vector<8x1xf32>,
    %c0_11 = arith.constant 0 : index
    %c0_12 = arith.constant 0 : index
    %12 = vector.load %arg5[%c0_11, %c0_12] : memref<8x1xf32, #tpu.memory_space<vmem>>, vector<8x1xf32>
    %13 = arith.mulf %5, %5 : vector<8x128xf32>
    %cst_13 = arith.constant dense<0.000000e+00> : vector<8xf32>
    %14 = vector.multi_reduction <add>, %13, %cst_13 [1] : vector<8x128xf32> to vector<8xf32>
    %15 = vector.shape_cast %14 : vector<8xf32> to vector<8x1xf32>
    %16 = arith.addf %12, %15 : vector<8x1xf32>
    %c0_14 = arith.constant 0 : index
    %c0_15 = arith.constant 0 : index
    %17 = vector.load %arg5[%c0_14, %c0_15] : memref<8x1xf32, #tpu.memory_space<vmem>>, vector<8x1xf32>
    tpu.vector_store %arg5[%c0_14, %c0_15], %16 {strides = array<i32>} : memref<8x1xf32, #tpu.memory_space<vmem>>, vector<8x1xf32>,
    return
  }
  func.func @transform_0(%arg0: i32) -> (i32, i32) {
    %c0_i32 = arith.constant 0 : i32
    %c0_i32_0 = arith.constant 0 : i32
    return %c0_i32, %arg0 : i32, i32
  }
  func.func @transform_1(%arg0: i32) -> (i32, i32) {
    %c0_i32 = arith.constant 0 : i32
    %c0_i32_0 = arith.constant 0 : i32
    %c0_i32_1 = arith.constant 0 : i32
    return %c0_i32, %c0_i32_0 : i32, i32
  }
  func.func @transform_2(%arg0: i32) -> (i32, i32) {
    %c0_i32 = arith.constant 0 : i32
    %c0_i32_0 = arith.constant 0 : i32
    return %c0_i32, %arg0 : i32, i32
  }
  func.func @transform_3(%arg0: i32) -> (i32, i32) {
    %c0_i32 = arith.constant 0 : i32
    %c0_i32_0 = arith.constant 0 : i32
    %c0_i32_1 = arith.constant 0 : i32
    return %c0_i32, %c0_i32_0 : i32, i32
  }
  func.func @transform_4(%arg0: i32) -> (i32, i32) {
    %c0_i32 = arith.constant 0 : i32
    %c0_i32_0 = arith.constant 0 : i32
    %c0_i32_1 = arith.constant 0 : i32
    return %c0_i32, %c0_i32_0 : i32, i32
  }
}

module attributes {stable_mosaic.version = 11 : i64} {
  func.func @bn_relu_kernel(%arg0: i32, %arg1: memref<8x128xf32, #tpu.memory_space<vmem>>, %arg2: memref<8x1xf32, #tpu.memory_space<vmem>>, %arg3: memref<8x1xf32, #tpu.memory_space<vmem>>, %arg4: memref<8x1xf32, #tpu.memory_space<vmem>>, %arg5: memref<8x1xf32, #tpu.memory_space<vmem>>, %arg6: memref<8x128xbf16, #tpu.memory_space<vmem>>) attributes {dimension_semantics = [#tpu.dimension_semantics<parallel>], iteration_bounds = array<i64: 1>, scalar_prefetch = 0 : i64, scratch_operands = 0 : i64, tpu.core_type = #tpu.core_type<tc>, window_params = [{transform_indices = @transform_0, window_bounds = array<i64: 8, 128>}, {pipeline_mode = #tpu.pipeline_mode<synchronous>, transform_indices = @transform_1, window_bounds = array<i64: 8, 1>}, {pipeline_mode = #tpu.pipeline_mode<synchronous>, transform_indices = @transform_2, window_bounds = array<i64: 8, 1>}, {pipeline_mode = #tpu.pipeline_mode<synchronous>, transform_indices = @transform_3, window_bounds = array<i64: 8, 1>}, {pipeline_mode = #tpu.pipeline_mode<synchronous>, transform_indices = @transform_4, window_bounds = array<i64: 8, 1>}, {transform_indices = @transform_5, window_bounds = array<i64: 8, 128>}]} {
    %c0 = arith.constant 0 : index
    %c0_0 = arith.constant 0 : index
    %0 = vector.load %arg2[%c0, %c0_0] : memref<8x1xf32, #tpu.memory_space<vmem>>, vector<8x1xf32>
    %cst = arith.constant 7.812500e-03 : f32
    %1 = vector.broadcast %cst : f32 to vector<8x1xf32>
    %2 = arith.mulf %0, %1 : vector<8x1xf32>
    %c0_1 = arith.constant 0 : index
    %c0_2 = arith.constant 0 : index
    %3 = vector.load %arg3[%c0_1, %c0_2] : memref<8x1xf32, #tpu.memory_space<vmem>>, vector<8x1xf32>
    %cst_3 = arith.constant 7.812500e-03 : f32
    %4 = vector.broadcast %cst_3 : f32 to vector<8x1xf32>
    %5 = arith.mulf %3, %4 : vector<8x1xf32>
    %6 = arith.mulf %2, %2 : vector<8x1xf32>
    %7 = arith.subf %5, %6 : vector<8x1xf32>
    %c0_4 = arith.constant 0 : index
    %c0_5 = arith.constant 0 : index
    %8 = vector.load %arg4[%c0_4, %c0_5] : memref<8x1xf32, #tpu.memory_space<vmem>>, vector<8x1xf32>
    %cst_6 = arith.constant 9.99999974E-6 : f32
    %9 = vector.broadcast %cst_6 : f32 to vector<8x1xf32>
    %10 = arith.addf %7, %9 : vector<8x1xf32>
    %11 = math.rsqrt %10 : vector<8x1xf32>
    %12 = arith.mulf %8, %11 : vector<8x1xf32>
    %c0_7 = arith.constant 0 : index
    %c0_8 = arith.constant 0 : index
    %13 = vector.load %arg5[%c0_7, %c0_8] : memref<8x1xf32, #tpu.memory_space<vmem>>, vector<8x1xf32>
    %14 = arith.mulf %2, %12 : vector<8x1xf32>
    %15 = arith.subf %13, %14 : vector<8x1xf32>
    %c0_9 = arith.constant 0 : index
    %c0_10 = arith.constant 0 : index
    %16 = vector.load %arg1[%c0_9, %c0_10] : memref<8x128xf32, #tpu.memory_space<vmem>>, vector<8x128xf32>
    %17 = vector.broadcast %12 : vector<8x1xf32> to vector<8x128xf32>
    %18 = arith.mulf %16, %17 : vector<8x128xf32>
    %19 = vector.broadcast %15 : vector<8x1xf32> to vector<8x128xf32>
    %20 = arith.addf %18, %19 : vector<8x128xf32>
    %cst_11 = arith.constant 0.000000e+00 : f32
    %21 = vector.broadcast %cst_11 : f32 to vector<8x128xf32>
    %22 = arith.maximumf %20, %21 : vector<8x128xf32>
    %23 = arith.truncf %22 : vector<8x128xf32> to vector<8x128xbf16>
    %c0_12 = arith.constant 0 : index
    %c0_13 = arith.constant 0 : index
    %24 = vector.load %arg6[%c0_12, %c0_13] : memref<8x128xbf16, #tpu.memory_space<vmem>>, vector<8x128xbf16>
    tpu.vector_store %arg6[%c0_12, %c0_13], %23 {strides = array<i32>} : memref<8x128xbf16, #tpu.memory_space<vmem>>, vector<8x128xbf16>,
    return
  }
  func.func @transform_0(%arg0: i32) -> (i32, i32) {
    %c0_i32 = arith.constant 0 : i32
    %c0_i32_0 = arith.constant 0 : i32
    return %c0_i32, %arg0 : i32, i32
  }
  func.func @transform_1(%arg0: i32) -> (i32, i32) {
    %c0_i32 = arith.constant 0 : i32
    %c0_i32_0 = arith.constant 0 : i32
    %c0_i32_1 = arith.constant 0 : i32
    return %c0_i32, %c0_i32_0 : i32, i32
  }
  func.func @transform_2(%arg0: i32) -> (i32, i32) {
    %c0_i32 = arith.constant 0 : i32
    %c0_i32_0 = arith.constant 0 : i32
    %c0_i32_1 = arith.constant 0 : i32
    return %c0_i32, %c0_i32_0 : i32, i32
  }
  func.func @transform_3(%arg0: i32) -> (i32, i32) {
    %c0_i32 = arith.constant 0 : i32
    %c0_i32_0 = arith.constant 0 : i32
    %c0_i32_1 = arith.constant 0 : i32
    return %c0_i32, %c0_i32_0 : i32, i32
  }
  func.func @transform_4(%arg0: i32) -> (i32, i32) {
    %c0_i32 = arith.constant 0 : i32
    %c0_i32_0 = arith.constant 0 : i32
    %c0_i32_1 = arith.constant 0 : i32
    return %c0_i32, %c0_i32_0 : i32, i32
  }
  func.func @transform_5(%arg0: i32) -> (i32, i32) {
    %c0_i32 = arith.constant 0 : i32
    %c0_i32_0 = arith.constant 0 : i32
    return %c0_i32, %arg0 : i32, i32
  }
}

module attributes {stable_mosaic.version = 11 : i64} {
  func.func @bn_relu_kernel(%arg0: i32, %arg1: memref<16x128xf32, #tpu.memory_space<vmem>>, %arg2: memref<16x1xf32, #tpu.memory_space<vmem>>, %arg3: memref<16x1xf32, #tpu.memory_space<vmem>>, %arg4: memref<16x1xf32, #tpu.memory_space<vmem>>, %arg5: memref<16x1xf32, #tpu.memory_space<vmem>>, %arg6: memref<16x128xbf16, #tpu.memory_space<vmem>>) attributes {dimension_semantics = [#tpu.dimension_semantics<parallel>], iteration_bounds = array<i64: 1>, scalar_prefetch = 0 : i64, scratch_operands = 0 : i64, tpu.core_type = #tpu.core_type<tc>, window_params = [{transform_indices = @transform_0, window_bounds = array<i64: 16, 128>}, {pipeline_mode = #tpu.pipeline_mode<synchronous>, transform_indices = @transform_1, window_bounds = array<i64: 16, 1>}, {pipeline_mode = #tpu.pipeline_mode<synchronous>, transform_indices = @transform_2, window_bounds = array<i64: 16, 1>}, {pipeline_mode = #tpu.pipeline_mode<synchronous>, transform_indices = @transform_3, window_bounds = array<i64: 16, 1>}, {pipeline_mode = #tpu.pipeline_mode<synchronous>, transform_indices = @transform_4, window_bounds = array<i64: 16, 1>}, {transform_indices = @transform_5, window_bounds = array<i64: 16, 128>}]} {
    %c0 = arith.constant 0 : index
    %c0_0 = arith.constant 0 : index
    %0 = vector.load %arg2[%c0, %c0_0] : memref<16x1xf32, #tpu.memory_space<vmem>>, vector<16x1xf32>
    %cst = arith.constant 3.125000e-02 : f32
    %1 = vector.broadcast %cst : f32 to vector<16x1xf32>
    %2 = arith.mulf %0, %1 : vector<16x1xf32>
    %c0_1 = arith.constant 0 : index
    %c0_2 = arith.constant 0 : index
    %3 = vector.load %arg3[%c0_1, %c0_2] : memref<16x1xf32, #tpu.memory_space<vmem>>, vector<16x1xf32>
    %cst_3 = arith.constant 3.125000e-02 : f32
    %4 = vector.broadcast %cst_3 : f32 to vector<16x1xf32>
    %5 = arith.mulf %3, %4 : vector<16x1xf32>
    %6 = arith.mulf %2, %2 : vector<16x1xf32>
    %7 = arith.subf %5, %6 : vector<16x1xf32>
    %c0_4 = arith.constant 0 : index
    %c0_5 = arith.constant 0 : index
    %8 = vector.load %arg4[%c0_4, %c0_5] : memref<16x1xf32, #tpu.memory_space<vmem>>, vector<16x1xf32>
    %cst_6 = arith.constant 9.99999974E-6 : f32
    %9 = vector.broadcast %cst_6 : f32 to vector<16x1xf32>
    %10 = arith.addf %7, %9 : vector<16x1xf32>
    %11 = math.rsqrt %10 : vector<16x1xf32>
    %12 = arith.mulf %8, %11 : vector<16x1xf32>
    %c0_7 = arith.constant 0 : index
    %c0_8 = arith.constant 0 : index
    %13 = vector.load %arg5[%c0_7, %c0_8] : memref<16x1xf32, #tpu.memory_space<vmem>>, vector<16x1xf32>
    %14 = arith.mulf %2, %12 : vector<16x1xf32>
    %15 = arith.subf %13, %14 : vector<16x1xf32>
    %c0_9 = arith.constant 0 : index
    %c0_10 = arith.constant 0 : index
    %16 = vector.load %arg1[%c0_9, %c0_10] : memref<16x128xf32, #tpu.memory_space<vmem>>, vector<16x128xf32>
    %17 = vector.broadcast %12 : vector<16x1xf32> to vector<16x128xf32>
    %18 = arith.mulf %16, %17 : vector<16x128xf32>
    %19 = vector.broadcast %15 : vector<16x1xf32> to vector<16x128xf32>
    %20 = arith.addf %18, %19 : vector<16x128xf32>
    %cst_11 = arith.constant 0.000000e+00 : f32
    %21 = vector.broadcast %cst_11 : f32 to vector<16x128xf32>
    %22 = arith.maximumf %20, %21 : vector<16x128xf32>
    %23 = arith.truncf %22 : vector<16x128xf32> to vector<16x128xbf16>
    %c0_12 = arith.constant 0 : index
    %c0_13 = arith.constant 0 : index
    %24 = vector.load %arg6[%c0_12, %c0_13] : memref<16x128xbf16, #tpu.memory_space<vmem>>, vector<16x128xbf16>
    tpu.vector_store %arg6[%c0_12, %c0_13], %23 {strides = array<i32>} : memref<16x128xbf16, #tpu.memory_space<vmem>>, vector<16x128xbf16>,
    return
  }
  func.func @transform_0(%arg0: i32) -> (i32, i32) {
    %c0_i32 = arith.constant 0 : i32
    %c0_i32_0 = arith.constant 0 : i32
    return %c0_i32, %arg0 : i32, i32
  }
  func.func @transform_1(%arg0: i32) -> (i32, i32) {
    %c0_i32 = arith.constant 0 : i32
    %c0_i32_0 = arith.constant 0 : i32
    %c0_i32_1 = arith.constant 0 : i32
    return %c0_i32, %c0_i32_0 : i32, i32
  }
  func.func @transform_2(%arg0: i32) -> (i32, i32) {
    %c0_i32 = arith.constant 0 : i32
    %c0_i32_0 = arith.constant 0 : i32
    %c0_i32_1 = arith.constant 0 : i32
    return %c0_i32, %c0_i32_0 : i32, i32
  }
  func.func @transform_3(%arg0: i32) -> (i32, i32) {
    %c0_i32 = arith.constant 0 : i32
    %c0_i32_0 = arith.constant 0 : i32
    %c0_i32_1 = arith.constant 0 : i32
    return %c0_i32, %c0_i32_0 : i32, i32
  }
  func.func @transform_4(%arg0: i32) -> (i32, i32) {
    %c0_i32 = arith.constant 0 : i32
    %c0_i32_0 = arith.constant 0 : i32
    %c0_i32_1 = arith.constant 0 : i32
    return %c0_i32, %c0_i32_0 : i32, i32
  }
  func.func @transform_5(%arg0: i32) -> (i32, i32) {
    %c0_i32 = arith.constant 0 : i32
    %c0_i32_0 = arith.constant 0 : i32
    return %c0_i32, %arg0 : i32, i32
  }
}

module attributes {stable_mosaic.version = 11 : i64} {
  func.func @conv_stats_kernel(%arg0: i32, %arg1: memref<128x128xbf16, #tpu.memory_space<vmem>>, %arg2: memref<16x128xbf16, #tpu.memory_space<vmem>>, %arg3: memref<16x128xf32, #tpu.memory_space<vmem>>, %arg4: memref<16x1xf32, #tpu.memory_space<vmem>>, %arg5: memref<16x1xf32, #tpu.memory_space<vmem>>) attributes {dimension_semantics = [#tpu.dimension_semantics<arbitrary>], iteration_bounds = array<i64: 1>, scalar_prefetch = 0 : i64, scratch_operands = 0 : i64, tpu.core_type = #tpu.core_type<tc>, window_params = [{transform_indices = @transform_0, window_bounds = array<i64: 128, 128>}, {pipeline_mode = #tpu.pipeline_mode<synchronous>, transform_indices = @transform_1, window_bounds = array<i64: 16, 128>}, {transform_indices = @transform_2, window_bounds = array<i64: 16, 128>}, {pipeline_mode = #tpu.pipeline_mode<synchronous>, transform_indices = @transform_3, window_bounds = array<i64: 16, 1>}, {pipeline_mode = #tpu.pipeline_mode<synchronous>, transform_indices = @transform_4, window_bounds = array<i64: 16, 1>}]} {
    %c0_i32 = arith.constant 0 : i32
    %0 = arith.cmpi eq, %arg0, %c0_i32 : i32
    %1 = arith.extui %0 : i1 to i32
    %c0_i32_0 = arith.constant 0 : i32
    %2 = arith.cmpi ne, %1, %c0_i32_0 : i32
    scf.if %2 {
      %cst_16 = arith.constant 0.000000e+00 : f32
      %18 = vector.broadcast %cst_16 : f32 to vector<16x1xf32>
      %c0_17 = arith.constant 0 : index
      %c0_18 = arith.constant 0 : index
      %19 = vector.load %arg4[%c0_17, %c0_18] : memref<16x1xf32, #tpu.memory_space<vmem>>, vector<16x1xf32>
      tpu.vector_store %arg4[%c0_17, %c0_18], %18 {strides = array<i32>} : memref<16x1xf32, #tpu.memory_space<vmem>>, vector<16x1xf32>,
      %cst_19 = arith.constant 0.000000e+00 : f32
      %20 = vector.broadcast %cst_19 : f32 to vector<16x1xf32>
      %c0_20 = arith.constant 0 : index
      %c0_21 = arith.constant 0 : index
      %21 = vector.load %arg5[%c0_20, %c0_21] : memref<16x1xf32, #tpu.memory_space<vmem>>, vector<16x1xf32>
      tpu.vector_store %arg5[%c0_20, %c0_21], %20 {strides = array<i32>} : memref<16x1xf32, #tpu.memory_space<vmem>>, vector<16x1xf32>,
    } else {
    }
    %c0 = arith.constant 0 : index
    %c0_1 = arith.constant 0 : index
    %3 = vector.load %arg2[%c0, %c0_1] : memref<16x128xbf16, #tpu.memory_space<vmem>>, vector<16x128xbf16>
    %c0_2 = arith.constant 0 : index
    %c0_3 = arith.constant 0 : index
    %4 = vector.load %arg1[%c0_2, %c0_3] : memref<128x128xbf16, #tpu.memory_space<vmem>>, vector<128x128xbf16>
    %cst = arith.constant dense<0.000000e+00> : vector<16x128xf32>
    %5 = tpu.matmul %3, %4, %cst {dimension_numbers = #tpu.dot_dimension_numbers<[1], [0], [0], [1], [0, 0, 1, 1], [], []>} : vector<16x128xbf16>, vector<128x128xbf16>, vector<16x128xf32> -> vector<16x128xf32>
    %c0_4 = arith.constant 0 : index
    %c0_5 = arith.constant 0 : index
    %6 = vector.load %arg3[%c0_4, %c0_5] : memref<16x128xf32, #tpu.memory_space<vmem>>, vector<16x128xf32>
    tpu.vector_store %arg3[%c0_4, %c0_5], %5 {strides = array<i32>} : memref<16x128xf32, #tpu.memory_space<vmem>>, vector<16x128xf32>,
    %c0_6 = arith.constant 0 : index
    %c0_7 = arith.constant 0 : index
    %7 = vector.load %arg4[%c0_6, %c0_7] : memref<16x1xf32, #tpu.memory_space<vmem>>, vector<16x1xf32>
    %cst_8 = arith.constant dense<0.000000e+00> : vector<16xf32>
    %8 = vector.multi_reduction <add>, %5, %cst_8 [1] : vector<16x128xf32> to vector<16xf32>
    %9 = vector.shape_cast %8 : vector<16xf32> to vector<16x1xf32>
    %10 = arith.addf %7, %9 : vector<16x1xf32>
    %c0_9 = arith.constant 0 : index
    %c0_10 = arith.constant 0 : index
    %11 = vector.load %arg4[%c0_9, %c0_10] : memref<16x1xf32, #tpu.memory_space<vmem>>, vector<16x1xf32>
    tpu.vector_store %arg4[%c0_9, %c0_10], %10 {strides = array<i32>} : memref<16x1xf32, #tpu.memory_space<vmem>>, vector<16x1xf32>,
    %c0_11 = arith.constant 0 : index
    %c0_12 = arith.constant 0 : index
    %12 = vector.load %arg5[%c0_11, %c0_12] : memref<16x1xf32, #tpu.memory_space<vmem>>, vector<16x1xf32>
    %13 = arith.mulf %5, %5 : vector<16x128xf32>
    %cst_13 = arith.constant dense<0.000000e+00> : vector<16xf32>
    %14 = vector.multi_reduction <add>, %13, %cst_13 [1] : vector<16x128xf32> to vector<16xf32>
    %15 = vector.shape_cast %14 : vector<16xf32> to vector<16x1xf32>
    %16 = arith.addf %12, %15 : vector<16x1xf32>
    %c0_14 = arith.constant 0 : index
    %c0_15 = arith.constant 0 : index
    %17 = vector.load %arg5[%c0_14, %c0_15] : memref<16x1xf32, #tpu.memory_space<vmem>>, vector<16x1xf32>
    tpu.vector_store %arg5[%c0_14, %c0_15], %16 {strides = array<i32>} : memref<16x1xf32, #tpu.memory_space<vmem>>, vector<16x1xf32>,
    return
  }
  func.func @transform_0(%arg0: i32) -> (i32, i32) {
    %c0_i32 = arith.constant 0 : i32
    %c0_i32_0 = arith.constant 0 : i32
    return %c0_i32, %arg0 : i32, i32
  }
  func.func @transform_1(%arg0: i32) -> (i32, i32) {
    %c0_i32 = arith.constant 0 : i32
    %c0_i32_0 = arith.constant 0 : i32
    %c0_i32_1 = arith.constant 0 : i32
    return %c0_i32, %c0_i32_0 : i32, i32
  }
  func.func @transform_2(%arg0: i32) -> (i32, i32) {
    %c0_i32 = arith.constant 0 : i32
    %c0_i32_0 = arith.constant 0 : i32
    return %c0_i32, %arg0 : i32, i32
  }
  func.func @transform_3(%arg0: i32) -> (i32, i32) {
    %c0_i32 = arith.constant 0 : i32
    %c0_i32_0 = arith.constant 0 : i32
    %c0_i32_1 = arith.constant 0 : i32
    return %c0_i32, %c0_i32_0 : i32, i32
  }
  func.func @transform_4(%arg0: i32) -> (i32, i32) {
    %c0_i32 = arith.constant 0 : i32
    %c0_i32_0 = arith.constant 0 : i32
    %c0_i32_1 = arith.constant 0 : i32
    return %c0_i32, %c0_i32_0 : i32, i32
  }
}

module attributes {stable_mosaic.version = 11 : i64} {
  func.func @heads_kernel(%arg0: i32, %arg1: memref<2x256xbf16, #tpu.memory_space<vmem>>, %arg2: memref<256x16xbf16, #tpu.memory_space<vmem>>, %arg3: memref<1x16xf32, #tpu.memory_space<vmem>>, %arg4: memref<2x16xf32, #tpu.memory_space<vmem>>) attributes {dimension_semantics = [#tpu.dimension_semantics<arbitrary>], iteration_bounds = array<i64: 1>, scalar_prefetch = 0 : i64, scratch_operands = 0 : i64, tpu.core_type = #tpu.core_type<tc>, window_params = [{transform_indices = @transform_0, window_bounds = array<i64: 2, 256>}, {transform_indices = @transform_1, window_bounds = array<i64: 256, 16>}, {pipeline_mode = #tpu.pipeline_mode<synchronous>, transform_indices = @transform_2, window_bounds = array<i64: 1, 16>}, {pipeline_mode = #tpu.pipeline_mode<synchronous>, transform_indices = @transform_3, window_bounds = array<i64: 2, 16>}]} {
    %c0_i32 = arith.constant 0 : i32
    %0 = arith.cmpi eq, %arg0, %c0_i32 : i32
    %1 = arith.extui %0 : i1 to i32
    %c0_i32_0 = arith.constant 0 : i32
    %2 = arith.cmpi ne, %1, %c0_i32_0 : i32
    scf.if %2 {
      %c0_8 = arith.constant 0 : index
      %c0_9 = arith.constant 0 : index
      %9 = vector.load %arg3[%c0_8, %c0_9] : memref<1x16xf32, #tpu.memory_space<vmem>>, vector<1x16xf32>
      %10 = vector.shape_cast %9 : vector<1x16xf32> to vector<1x16xf32>
      %11 = vector.broadcast %10 : vector<1x16xf32> to vector<2x16xf32>
      %c0_10 = arith.constant 0 : index
      %c0_11 = arith.constant 0 : index
      %12 = vector.load %arg4[%c0_10, %c0_11] : memref<2x16xf32, #tpu.memory_space<vmem>>, vector<2x16xf32>
      tpu.vector_store %arg4[%c0_10, %c0_11], %11 {strides = array<i32>} : memref<2x16xf32, #tpu.memory_space<vmem>>, vector<2x16xf32>,
    } else {
    }
    %c0 = arith.constant 0 : index
    %c0_1 = arith.constant 0 : index
    %3 = vector.load %arg4[%c0, %c0_1] : memref<2x16xf32, #tpu.memory_space<vmem>>, vector<2x16xf32>
    %c0_2 = arith.constant 0 : index
    %c0_3 = arith.constant 0 : index
    %4 = vector.load %arg1[%c0_2, %c0_3] : memref<2x256xbf16, #tpu.memory_space<vmem>>, vector<2x256xbf16>
    %c0_4 = arith.constant 0 : index
    %c0_5 = arith.constant 0 : index
    %5 = vector.load %arg2[%c0_4, %c0_5] : memref<256x16xbf16, #tpu.memory_space<vmem>>, vector<256x16xbf16>
    %cst = arith.constant dense<0.000000e+00> : vector<2x16xf32>
    %6 = tpu.matmul %4, %5, %cst {dimension_numbers = #tpu.dot_dimension_numbers<[1], [0], [0], [1], [0, 0, 1, 1], [], []>} : vector<2x256xbf16>, vector<256x16xbf16>, vector<2x16xf32> -> vector<2x16xf32>
    %7 = arith.addf %3, %6 : vector<2x16xf32>
    %c0_6 = arith.constant 0 : index
    %c0_7 = arith.constant 0 : index
    %8 = vector.load %arg4[%c0_6, %c0_7] : memref<2x16xf32, #tpu.memory_space<vmem>>, vector<2x16xf32>
    tpu.vector_store %arg4[%c0_6, %c0_7], %7 {strides = array<i32>} : memref<2x16xf32, #tpu.memory_space<vmem>>, vector<2x16xf32>,
    return
  }
  func.func @transform_0(%arg0: i32) -> (i32, i32) {
    %c0_i32 = arith.constant 0 : i32
    %c0_i32_0 = arith.constant 0 : i32
    return %c0_i32, %arg0 : i32, i32
  }
  func.func @transform_1(%arg0: i32) -> (i32, i32) {
    %c0_i32 = arith.constant 0 : i32
    %c0_i32_0 = arith.constant 0 : i32
    return %arg0, %c0_i32 : i32, i32
  }
  func.func @transform_2(%arg0: i32) -> (i32, i32) {
    %c0_i32 = arith.constant 0 : i32
    %c0_i32_0 = arith.constant 0 : i32
    %c0_i32_1 = arith.constant 0 : i32
    return %c0_i32, %c0_i32_0 : i32, i32
  }
  func.func @transform_3(%arg0: i32) -> (i32, i32) {
    %c0_i32 = arith.constant 0 : i32
    %c0_i32_0 = arith.constant 0 : i32
    %c0_i32_1 = arith.constant 0 : i32
    return %c0_i32, %c0_i32_0 : i32, i32
  }
}

</mosaic_0001>

<llo_original>
// kernel: encoder_forward.6
$region0: #{encoder_forward.6}
  #allocation0 [shape = 'u32[]', space=smem, size = 0x4, offset = 0x4, fixed_abs, tag = 'smem constant byte address 0x4 - core index']
  #allocation1 [shape = 'u32[144,128]{1,0:T(1,128)}', space=vmem, size = 0x12000, scoped, tag = 'internal scratch']
  %s0 = inlined_call_operand.vmem [shape: f32[8,128], index: 0, kind: input, shape index: {}]
  %s1 = inlined_call_operand.vmem [shape: f32[8,1], index: 1, kind: input, shape index: {}]
  %s2 = inlined_call_operand.vmem [shape: f32[8,1], index: 2, kind: input, shape index: {}]
  %s3 = inlined_call_operand.vmem [shape: f32[8,1], index: 3, kind: input, shape index: {}]
  %s4 = inlined_call_operand.vmem [shape: f32[8,1], index: 4, kind: input, shape index: {}]
  %s5 = inlined_call_operand.vmem [shape: bf16[8,128], index: 5, kind: output, shape index: {}]
  %s6 = sld [smem:[#allocation0]]
  $region30: #{encoder_forward.6} parent=0
    _
  %s8 = ssub.s32 1, %s6
  %s9 = scalar_select 0, %s8, %s6
  // Predicated region
  $region2: #{encoder_forward.6} parent=0 // pred_check
    _
  $region3: #{encoder_forward.6} parent=0 // pred_check_branch
    %11 = sbr.rel (0) target = $region5
  $region4: #{encoder_forward.6} parent=0 // pred_region
    _
  $region5: #{encoder_forward.6} parent=0 // pred_fallthru
    _
  // Predicated region
  $region6: #{encoder_forward.6} parent=0 // pred_check
    _
  $region7: #{encoder_forward.6} parent=0 // pred_check_branch
    %13 = sbr.rel (0) target = $region9
  $region8: #{encoder_forward.6} parent=0 // pred_region
    _
  $region9: #{encoder_forward.6} parent=0 // pred_fallthru
    _
  // Predicated region
  $region10: #{encoder_forward.6} parent=0 // pred_check
    _
  $region11: #{encoder_forward.6} parent=0 // pred_check_branch
    %15 = sbr.rel (0) target = $region13
  $region12: #{encoder_forward.6} parent=0 // pred_region
    _
  $region13: #{encoder_forward.6} parent=0 // pred_fallthru
    _
  // Predicated region
  $region14: #{encoder_forward.6} parent=0 // pred_check
    _
  $region15: #{encoder_forward.6} parent=0 // pred_check_branch
    %17 = sbr.rel (0) target = $region17
  $region16: #{encoder_forward.6} parent=0 // pred_region
    _
  $region17: #{encoder_forward.6} parent=0 // pred_fallthru
    _
  // Predicated region
  $region18: #{encoder_forward.6} parent=0 // pred_check
    _
  $region19: #{encoder_forward.6} parent=0 // pred_check_branch
    %19 = sbr.rel (0) target = $region21
  $region20: #{encoder_forward.6} parent=0 // pred_region
    _
  $region21: #{encoder_forward.6} parent=0 // pred_fallthru
    _
  %v20 = vld [vmem:[%s1] sm:$0xff]
  %v21 = vmul.f32 %v20, 0.0078125
  %v22 = vld [vmem:[%s2] sm:$0xff]
  %v23 = vmul.f32 %v22, 0.0078125
  %v24 = vmul.f32 %v21, %v21
  %v25 = vsub.f32 %v23, %v24
  %v26 = vld [vmem:[%s3] sm:$0xff]
  %v27 = vadd.f32 %v25, 1e-05
  %v28 = vrsqrt.pop %v27
  %v29 = vmul.f32 %v26, %v28
  %v30 = vld [vmem:[%s4] sm:$0xff]
  %v31 = vmul.f32 %v21, %v29
  %v32 = vsub.f32 %v30, %v31
  %v33 = vld [vmem:[%s0] sm:$0xff]
  %35 = vset.pattern.permute.xlu0 0
  %36 = vperm.xlu0 %35, %v29
  %v37 = vpop.permute.xlu0 %36
  %v39 = vmul.f32 %v33, %v37
  %41 = vset.pattern.permute.xlu0 0
  %42 = vperm.xlu0 %41, %v32
  %v43 = vpop.permute.xlu0 %42
  %v45 = vadd.f32 %v39, %v43
  %v46 = vmax.f32 %v45, 0.0
  %v47 = vpack.c.bf16 %v46, %v46
  %48 = vst [vmem:[%s5] sm:$0xf] %v47
  // Predicated region
  $region22: #{encoder_forward.6} parent=0 // pred_check
    _
  $region23: #{encoder_forward.6} parent=0 // pred_check_branch
    %50 = sbr.rel (0) target = $region25
  $region24: #{encoder_forward.6} parent=0 // pred_region
    _
  $region25: #{encoder_forward.6} parent=0 // pred_fallthru
    _
  // Predicated region
  $region26: #{encoder_forward.6} parent=0 // pred_check
    _
  $region27: #{encoder_forward.6} parent=0 // pred_check_branch
    %52 = sbr.rel (0) target = $region29
  $region28: #{encoder_forward.6} parent=0 // pred_region
    _
  $region29: #{encoder_forward.6} parent=0 // pred_fallthru
    _

// kernel: encoder_forward.5
$region0: #{encoder_forward.5}
  #allocation0 [shape = 'u32[]', space=smem, size = 0x4, offset = 0x4, fixed_abs, tag = 'smem constant byte address 0x4 - core index']
  #allocation1 [shape = 'u32[144,128]{1,0:T(1,128)}', space=vmem, size = 0x12000, scoped, tag = 'internal scratch']
  %s0 = inlined_call_operand.vmem [shape: bf16[128,128], index: 0, kind: input, shape index: {}]
  %s1 = inlined_call_operand.vmem [shape: bf16[8,128], index: 1, kind: input, shape index: {}]
  %s2 = inlined_call_operand.vmem [shape: f32[8,128], index: 2, kind: output, shape index: {0}]
  %s3 = inlined_call_operand.vmem [shape: f32[8,1], index: 3, kind: output, shape index: {1}]
  %s4 = inlined_call_operand.vmem [shape: f32[8,1], index: 4, kind: output, shape index: {2}]
  %5 = xla_tuple %s2, %s3, %s4
  %s6 = sld [smem:[#allocation0]]
  $region38: #{encoder_forward.5} parent=0
    _
  %s8 = ssub.s32 1, %s6
  %s9 = scalar_select 0, %s8, %s6
  // Predicated region
  $region2: #{encoder_forward.5} parent=0 // pred_check
    _
  $region3: #{encoder_forward.5} parent=0 // pred_check_branch
    %11 = sbr.rel (0) target = $region5
  $region4: #{encoder_forward.5} parent=0 // pred_region
    _
  $region5: #{encoder_forward.5} parent=0 // pred_fallthru
    _
  // Predicated region
  $region6: #{encoder_forward.5} parent=0 // pred_check
    _
  $region7: #{encoder_forward.5} parent=0 // pred_check_branch
    %13 = sbr.rel (0) target = $region9
  $region8: #{encoder_forward.5} parent=0 // pred_region
    _
  $region9: #{encoder_forward.5} parent=0 // pred_fallthru
    _
  %p15 = scmp.eq.s32.totalorder 0, 0
  // Predicated region
  $region10: #{encoder_forward.5} parent=0 // pred_check
    %p16 = pneg %p15
  $region11: #{encoder_forward.5} parent=0 // pred_check_branch
    %18 = sbr.rel (%p16) target = $region13
  $region12: #{encoder_forward.5} parent=0 // pred_region
    %vm19 = vcmask 7168
    %20 = vst.msk [vmem:[%s3] sm:$0xff] %vm19, 0.0
    %21 = vst.msk [vmem:[%s4] sm:$0xff] %vm19, 0.0
  $region13: #{encoder_forward.5} parent=0 // pred_fallthru
    _
  %v22 = vld [vmem:[%s1] sm:$0xf]
  %v23 = vld [vmem:[%s0] sm:$0xf]
  %v24 = vld [vmem:[%s0 + $0x4] sm:$0xf]
  %v25 = vld [vmem:[%s0 + $0x8] sm:$0xf]
  %v26 = vld [vmem:[%s0 + $0xc] sm:$0xf]
  %v27 = vld [vmem:[%s0 + $0x10] sm:$0xf]
  %v28 = vld [vmem:[%s0 + $0x14] sm:$0xf]
  %v29 = vld [vmem:[%s0 + $0x18] sm:$0xf]
  %v30 = vld [vmem:[%s0 + $0x1c] sm:$0xf]
  %v31 = vld [vmem:[%s0 + $0x20] sm:$0xf]
  %v32 = vld [vmem:[%s0 + $0x24] sm:$0xf]
  %v33 = vld [vmem:[%s0 + $0x28] sm:$0xf]
  %v34 = vld [vmem:[%s0 + $0x2c] sm:$0xf]
  %v35 = vld [vmem:[%s0 + $0x30] sm:$0xf]
  %v36 = vld [vmem:[%s0 + $0x34] sm:$0xf]
  %v37 = vld [vmem:[%s0 + $0x38] sm:$0xf]
  %v38 = vld [vmem:[%s0 + $0x3c] sm:$0xf]
  %v55 = vunpack.c.l.b16 %v23
  %v56 = vunpack.c.l.b16 %v24
  %v57 = vunpack.c.l.b16 %v25
  %v58 = vunpack.c.l.b16 %v26
  %v59 = vunpack.c.l.b16 %v27
  %v60 = vunpack.c.l.b16 %v28
  %v61 = vunpack.c.l.b16 %v29
  %v62 = vunpack.c.l.b16 %v30
  %v63 = vunpack.c.l.b16 %v31
  %v64 = vunpack.c.l.b16 %v32
  %v65 = vunpack.c.l.b16 %v33
  %v66 = vunpack.c.l.b16 %v34
  %v67 = vunpack.c.l.b16 %v35
  %v68 = vunpack.c.l.b16 %v36
  %v69 = vunpack.c.l.b16 %v37
  %v70 = vunpack.c.l.b16 %v38
  %v71 = vpack.c.b16 %v56, %v55
  %v72 = vpack.c.b16 %v58, %v57
  %v73 = vpack.c.b16 %v60, %v59
  %v74 = vpack.c.b16 %v62, %v61
  %v75 = vpack.c.b16 %v64, %v63
  %v76 = vpack.c.b16 %v66, %v65
  %v77 = vpack.c.b16 %v68, %v67
  %v78 = vpack.c.b16 %v70, %v69
  %87 = vmatprep.subr.bf16.mxu0 0
  %88 = vmatpush1.bf16.msra.mxu0 %v78
  %89 = vmatprep.subr.bf16.mxu0 0
  %90 = vmatpush1.bf16.msra.mxu0 %v77
  %91 = vmatprep.subr.bf16.mxu0 0
  %92 = vmatpush1.bf16.msra.mxu0 %v76
  %93 = vmatprep.subr.bf16.mxu0 0
  %94 = vmatpush1.bf16.msra.mxu0 %v75
  %95 = vmatprep.subr.bf16.mxu0 0
  %96 = vmatpush1.bf16.msra.mxu0 %v74
  %97 = vmatprep.subr.bf16.mxu0 0
  %98 = vmatpush1.bf16.msra.mxu0 %v73
  %99 = vmatprep.subr.bf16.mxu0 0
  %100 = vmatpush1.bf16.msra.mxu0 %v72
  %101 = vmatprep.subr.bf16.mxu0 0
  %102 = vmatpush1.bf16.msra.mxu0 %v71
  %103 = vmatprep.subr.bf16.mxu0 0
  %104 = vmatpush2.bf16.msra.mxu0 0
  %105 = vmatprep.subr.bf16.mxu0 0
  %106 = vmatpush2.bf16.msra.mxu0 0
  %107 = vmatprep.subr.bf16.mxu0 0
  %108 = vmatpush2.bf16.msra.mxu0 0
  %109 = vmatprep.subr.bf16.mxu0 0
  %110 = vmatpush2.bf16.msra.mxu0 0
  %111 = vmatprep.subr.bf16.mxu0 0
  %112 = vmatpush2.bf16.msra.mxu0 0
  %113 = vmatprep.subr.bf16.mxu0 0
  %114 = vmatpush2.bf16.msra.mxu0 0
  %115 = vmatprep.subr.bf16.mxu0 0
  %116 = vmatpush2.bf16.msra.mxu0 0
  %117 = vmatprep.subr.bf16.mxu0 0
  %118 = vmatpush2.bf16.msra.mxu0 0
  %119 = vmatprep.mubr.bf16.mxu0 0
  %120 = vmatmul.mubr.bf16.gmra.mxu0 %v22
  %v121 = vpop.f32.mrf.mxu0
  %v122 = vadd.f32 0.0, %v121
  %v123 = vpop.f32.mrf.mxu0
  %v124 = vpop.f32.mrf.mxu0
  %v125 = vpop.f32.mrf.mxu0
  %126 = vdwg.mxu0
  %127 = vst [vmem:[%s2] sm:$0xff] %v122
  %v128 = vld [vmem:[%s3] sm:$0xff]
  %129 = vadd.xlane.f32.xlu0 %v122
  %v130 = vpop.xlane.xlu0 %129
  %v131 = vadd.f32 %v128, %v130
  %vm132 = vcmask 7168
  %133 = vst.msk [vmem:[%s3] sm:$0xff] %vm132, %v131
  %v134 = vld [vmem:[%s4] sm:$0xff]
  %v135 = vmul.f32 %v122, %v122
  %136 = vadd.xlane.f32.xlu0 %v135
  %v137 = vpop.xlane.xlu0 %136
  %v138 = vadd.f32 %v134, %v137
  %139 = vst.msk [vmem:[%s4] sm:$0xff] %vm132, %v138
  // Predicated region
  $region14: #{encoder_forward.5} parent=0 // pred_check
    _
  $region15: #{encoder_forward.5} parent=0 // pred_check_branch
    %141 = sbr.rel (0) target = $region17
  $region16: #{encoder_forward.5} parent=0 // pred_region
    _
  $region17: #{encoder_forward.5} parent=0 // pred_fallthru
    _
  // Predicated region
  $region18: #{encoder_forward.5} parent=0 // pred_check
    _
  $region19: #{encoder_forward.5} parent=0 // pred_check_branch
    %143 = sbr.rel (0) target = $region21
  $region20: #{encoder_forward.5} parent=0 // pred_region
    _
  $region21: #{encoder_forward.5} parent=0 // pred_fallthru
    _
  // Predicated region
  $region22: #{encoder_forward.5} parent=0 // pred_check
    _
  $region23: #{encoder_forward.5} parent=0 // pred_check_branch
    %145 = sbr.rel (0) target = $region25
  $region24: #{encoder_forward.5} parent=0 // pred_region
    _
  $region25: #{encoder_forward.5} parent=0 // pred_fallthru
    _
  // Predicated region
  $region26: #{encoder_forward.5} parent=0 // pred_check
    _
  $region27: #{encoder_forward.5} parent=0 // pred_check_branch
    %147 = sbr.rel (0) target = $region29
  $region28: #{encoder_forward.5} parent=0 // pred_region
    _
  $region29: #{encoder_forward.5} parent=0 // pred_fallthru
    _
  // Predicated region
  $region30: #{encoder_forward.5} parent=0 // pred_check
    _
  $region31: #{encoder_forward.5} parent=0 // pred_check_branch
    %149 = sbr.rel (0) target = $region33
  $region32: #{encoder_forward.5} parent=0 // pred_region
    _
  $region33: #{encoder_forward.5} parent=0 // pred_fallthru
    _
  // Predicated region
  $region34: #{encoder_forward.5} parent=0 // pred_check
    _
  $region35: #{encoder_forward.5} parent=0 // pred_check_branch
    %151 = sbr.rel (0) target = $region37
  $region36: #{encoder_forward.5} parent=0 // pred_region
    _
  $region37: #{encoder_forward.5} parent=0 // pred_fallthru
    _

// kernel: encoder_forward.8
$region0: #{encoder_forward.8}
  #allocation0 [shape = 'u32[]', space=smem, size = 0x4, offset = 0x4, fixed_abs, tag = 'smem constant byte address 0x4 - core index']
  #allocation1 [shape = 'u32[144,128]{1,0:T(1,128)}', space=vmem, size = 0x12000, scoped, tag = 'internal scratch']
  %s0 = inlined_call_operand.vmem [shape: f32[16,128], index: 0, kind: input, shape index: {}]
  %s1 = inlined_call_operand.vmem [shape: f32[16,1], index: 1, kind: input, shape index: {}]
  %s2 = inlined_call_operand.vmem [shape: f32[16,1], index: 2, kind: input, shape index: {}]
  %s3 = inlined_call_operand.vmem [shape: f32[16,1], index: 3, kind: input, shape index: {}]
  %s4 = inlined_call_operand.vmem [shape: f32[16,1], index: 4, kind: input, shape index: {}]
  %s5 = inlined_call_operand.vmem [shape: bf16[16,128], index: 5, kind: output, shape index: {}]
  %s6 = sld [smem:[#allocation0]]
  $region30: #{encoder_forward.8} parent=0
    _
  %s8 = ssub.s32 1, %s6
  %s9 = scalar_select 0, %s8, %s6
  // Predicated region
  $region2: #{encoder_forward.8} parent=0 // pred_check
    _
  $region3: #{encoder_forward.8} parent=0 // pred_check_branch
    %11 = sbr.rel (0) target = $region5
  $region4: #{encoder_forward.8} parent=0 // pred_region
    _
  $region5: #{encoder_forward.8} parent=0 // pred_fallthru
    _
  // Predicated region
  $region6: #{encoder_forward.8} parent=0 // pred_check
    _
  $region7: #{encoder_forward.8} parent=0 // pred_check_branch
    %13 = sbr.rel (0) target = $region9
  $region8: #{encoder_forward.8} parent=0 // pred_region
    _
  $region9: #{encoder_forward.8} parent=0 // pred_fallthru
    _
  // Predicated region
  $region10: #{encoder_forward.8} parent=0 // pred_check
    _
  $region11: #{encoder_forward.8} parent=0 // pred_check_branch
    %15 = sbr.rel (0) target = $region13
  $region12: #{encoder_forward.8} parent=0 // pred_region
    _
  $region13: #{encoder_forward.8} parent=0 // pred_fallthru
    _
  // Predicated region
  $region14: #{encoder_forward.8} parent=0 // pred_check
    _
  $region15: #{encoder_forward.8} parent=0 // pred_check_branch
    %17 = sbr.rel (0) target = $region17
  $region16: #{encoder_forward.8} parent=0 // pred_region
    _
  $region17: #{encoder_forward.8} parent=0 // pred_fallthru
    _
  // Predicated region
  $region18: #{encoder_forward.8} parent=0 // pred_check
    _
  $region19: #{encoder_forward.8} parent=0 // pred_check_branch
    %19 = sbr.rel (0) target = $region21
  $region20: #{encoder_forward.8} parent=0 // pred_region
    _
  $region21: #{encoder_forward.8} parent=0 // pred_fallthru
    _
  %v20 = vld [vmem:[%s1] sm:$0xff]
  %v21 = vld [vmem:[%s1 + $0x8] sm:$0xff]
  %v22 = vmul.f32 %v20, 0.03125
  %v23 = vmul.f32 %v21, 0.03125
  %v24 = vld [vmem:[%s2] sm:$0xff]
  %v25 = vld [vmem:[%s2 + $0x8] sm:$0xff]
  %v26 = vmul.f32 %v24, 0.03125
  %v27 = vmul.f32 %v25, 0.03125
  %v28 = vmul.f32 %v22, %v22
  %v29 = vmul.f32 %v23, %v23
  %v30 = vsub.f32 %v26, %v28
  %v31 = vsub.f32 %v27, %v29
  %v32 = vld [vmem:[%s3] sm:$0xff]
  %v33 = vld [vmem:[%s3 + $0x8] sm:$0xff]
  %v34 = vadd.f32 %v30, 1e-05
  %v35 = vadd.f32 %v31, 1e-05
  %v36 = vrsqrt.pop %v34
  %v37 = vrsqrt.pop %v35
  %v38 = vmul.f32 %v32, %v36
  %v39 = vmul.f32 %v33, %v37
  %v40 = vld [vmem:[%s4] sm:$0xff]
  %v41 = vld [vmem:[%s4 + $0x8] sm:$0xff]
  %v42 = vmul.f32 %v22, %v38
  %v43 = vmul.f32 %v23, %v39
  %v44 = vsub.f32 %v40, %v42
  %v45 = vsub.f32 %v41, %v43
  %v46 = vld [vmem:[%s0] sm:$0xff]
  %v47 = vld [vmem:[%s0 + $0x8] sm:$0xff]
  %49 = vset.pattern.permute.xlu0 0
  %50 = vperm.xlu0 %49, %v38
  %v51 = vpop.permute.xlu0 %50
  %54 = vset.pattern.permute.xlu0 0
  %55 = vperm.xlu0 %54, %v39
  %v56 = vpop.permute.xlu0 %55
  %v58 = vmul.f32 %v46, %v51
  %v59 = vmul.f32 %v47, %v56
  %61 = vset.pattern.permute.xlu0 0
  %62 = vperm.xlu0 %61, %v44
  %v63 = vpop.permute.xlu0 %62
  %66 = vset.pattern.permute.xlu0 0
  %67 = vperm.xlu0 %66, %v45
  %v68 = vpop.permute.xlu0 %67
  %v70 = vadd.f32 %v58, %v63
  %v71 = vadd.f32 %v59, %v68
  %v72 = vmax.f32 %v70, 0.0
  %v73 = vmax.f32 %v71, 0.0
  %v74 = vpack.c.bf16 %v73, %v72
  %v76 = vunpack.c.l.b16 %v74
  %v77 = vunpack.c.h.b16 %v74
  %v78 = vpack.c.b16 %v76, %v76
  %v79 = vpack.c.b16 %v77, %v77
  %82 = vst [vmem:[%s5] sm:$0xf] %v78
  %83 = vst [vmem:[%s5 + $0x4] sm:$0xf] %v79
  // Predicated region
  $region22: #{encoder_forward.8} parent=0 // pred_check
    _
  $region23: #{encoder_forward.8} parent=0 // pred_check_branch
    %85 = sbr.rel (0) target = $region25
  $region24: #{encoder_forward.8} parent=0 // pred_region
    _
  $region25: #{encoder_forward.8} parent=0 // pred_fallthru
    _
  // Predicated region
  $region26: #{encoder_forward.8} parent=0 // pred_check
    _
  $region27: #{encoder_forward.8} parent=0 // pred_check_branch
    %87 = sbr.rel (0) target = $region29
  $region28: #{encoder_forward.8} parent=0 // pred_region
    _
  $region29: #{encoder_forward.8} parent=0 // pred_fallthru
    _

// kernel: encoder_forward.7
$region0: #{encoder_forward.7}
  #allocation0 [shape = 'u32[]', space=smem, size = 0x4, offset = 0x4, fixed_abs, tag = 'smem constant byte address 0x4 - core index']
  #allocation1 [shape = 'u32[144,128]{1,0:T(1,128)}', space=vmem, size = 0x12000, scoped, tag = 'internal scratch']
  %s0 = inlined_call_operand.vmem [shape: bf16[128,128], index: 0, kind: input, shape index: {}]
  %s1 = inlined_call_operand.vmem [shape: bf16[16,128], index: 1, kind: input, shape index: {}]
  %s2 = inlined_call_operand.vmem [shape: f32[16,128], index: 2, kind: output, shape index: {0}]
  %s3 = inlined_call_operand.vmem [shape: f32[16,1], index: 3, kind: output, shape index: {1}]
  %s4 = inlined_call_operand.vmem [shape: f32[16,1], index: 4, kind: output, shape index: {2}]
  %5 = xla_tuple %s2, %s3, %s4
  %s6 = sld [smem:[#allocation0]]
  $region38: #{encoder_forward.7} parent=0
    _
  %s8 = ssub.s32 1, %s6
  %s9 = scalar_select 0, %s8, %s6
  // Predicated region
  $region2: #{encoder_forward.7} parent=0 // pred_check
    _
  $region3: #{encoder_forward.7} parent=0 // pred_check_branch
    %11 = sbr.rel (0) target = $region5
  $region4: #{encoder_forward.7} parent=0 // pred_region
    _
  $region5: #{encoder_forward.7} parent=0 // pred_fallthru
    _
  // Predicated region
  $region6: #{encoder_forward.7} parent=0 // pred_check
    _
  $region7: #{encoder_forward.7} parent=0 // pred_check_branch
    %13 = sbr.rel (0) target = $region9
  $region8: #{encoder_forward.7} parent=0 // pred_region
    _
  $region9: #{encoder_forward.7} parent=0 // pred_fallthru
    _
  %p15 = scmp.eq.s32.totalorder 0, 0
  // Predicated region
  $region10: #{encoder_forward.7} parent=0 // pred_check
    %p16 = pneg %p15
  $region11: #{encoder_forward.7} parent=0 // pred_check_branch
    %18 = sbr.rel (%p16) target = $region13
  $region12: #{encoder_forward.7} parent=0 // pred_region
    %vm19 = vcmask 7168
    %20 = vst.msk [vmem:[%s3] sm:$0xff] %vm19, 0.0
    %21 = vst.msk [vmem:[%s3 + $0x8] sm:$0xff] %vm19, 0.0
    %22 = vst.msk [vmem:[%s4] sm:$0xff] %vm19, 0.0
    %23 = vst.msk [vmem:[%s4 + $0x8] sm:$0xff] %vm19, 0.0
  $region13: #{encoder_forward.7} parent=0 // pred_fallthru
    _
  %v24 = vld [vmem:[%s1] sm:$0xf]
  %v25 = vld [vmem:[%s1 + $0x4] sm:$0xf]
  %v26 = vld [vmem:[%s0] sm:$0xf]
  %v27 = vld [vmem:[%s0 + $0x4] sm:$0xf]
  %v28 = vld [vmem:[%s0 + $0x8] sm:$0xf]
  %v29 = vld [vmem:[%s0 + $0xc] sm:$0xf]
  %v30 = vld [vmem:[%s0 + $0x10] sm:$0xf]
  %v31 = vld [vmem:[%s0 + $0x14] sm:$0xf]
  %v32 = vld [vmem:[%s0 + $0x18] sm:$0xf]
  %v33 = vld [vmem:[%s0 + $0x1c] sm:$0xf]
  %v34 = vld [vmem:[%s0 + $0x20] sm:$0xf]
  %v35 = vld [vmem:[%s0 + $0x24] sm:$0xf]
  %v36 = vld [vmem:[%s0 + $0x28] sm:$0xf]
  %v37 = vld [vmem:[%s0 + $0x2c] sm:$0xf]
  %v38 = vld [vmem:[%s0 + $0x30] sm:$0xf]
  %v39 = vld [vmem:[%s0 + $0x34] sm:$0xf]
  %v40 = vld [vmem:[%s0 + $0x38] sm:$0xf]
  %v41 = vld [vmem:[%s0 + $0x3c] sm:$0xf]
  %v44 = vunpack.c.l.b16 %v24
  %v45 = vunpack.c.l.b16 %v25
  %v46 = vpack.c.b16 %v45, %v44
  %v64 = vunpack.c.l.b16 %v26
  %v65 = vunpack.c.l.b16 %v27
  %v66 = vunpack.c.l.b16 %v28
  %v67 = vunpack.c.l.b16 %v29
  %v68 = vunpack.c.l.b16 %v30
  %v69 = vunpack.c.l.b16 %v31
  %v70 = vunpack.c.l.b16 %v32
  %v71 = vunpack.c.l.b16 %v33
  %v72 = vunpack.c.l.b16 %v34
  %v73 = vunpack.c.l.b16 %v35
  %v74 = vunpack.c.l.b16 %v36
  %v75 = vunpack.c.l.b16 %v37
  %v76 = vunpack.c.l.b16 %v38
  %v77 = vunpack.c.l.b16 %v39
  %v78 = vunpack.c.l.b16 %v40
  %v79 = vunpack.c.l.b16 %v41
  %v80 = vpack.c.b16 %v65, %v64
  %v81 = vpack.c.b16 %v67, %v66
  %v82 = vpack.c.b16 %v69, %v68
  %v83 = vpack.c.b16 %v71, %v70
  %v84 = vpack.c.b16 %v73, %v72
  %v85 = vpack.c.b16 %v75, %v74
  %v86 = vpack.c.b16 %v77, %v76
  %v87 = vpack.c.b16 %v79, %v78
  %96 = vmatprep.subr.bf16.mxu0 0
  %97 = vmatpush1.bf16.msra.mxu0 %v87
  %98 = vmatprep.subr.bf16.mxu0 0
  %99 = vmatpush1.bf16.msra.mxu0 %v86
  %100 = vmatprep.subr.bf16.mxu0 0
  %101 = vmatpush1.bf16.msra.mxu0 %v85
  %102 = vmatprep.subr.bf16.mxu0 0
  %103 = vmatpush1.bf16.msra.mxu0 %v84
  %104 = vmatprep.subr.bf16.mxu0 0
  %105 = vmatpush1.bf16.msra.mxu0 %v83
  %106 = vmatprep.subr.bf16.mxu0 0
  %107 = vmatpush1.bf16.msra.mxu0 %v82
  %108 = vmatprep.subr.bf16.mxu0 0
  %109 = vmatpush1.bf16.msra.mxu0 %v81
  %110 = vmatprep.subr.bf16.mxu0 0
  %111 = vmatpush1.bf16.msra.mxu0 %v80
  %112 = vmatprep.subr.bf16.mxu0 0
  %113 = vmatpush2.bf16.msra.mxu0 0
  %114 = vmatprep.subr.bf16.mxu0 0
  %115 = vmatpush2.bf16.msra.mxu0 0
  %116 = vmatprep.subr.bf16.mxu0 0
  %117 = vmatpush2.bf16.msra.mxu0 0
  %118 = vmatprep.subr.bf16.mxu0 0
  %119 = vmatpush2.bf16.msra.mxu0 0
  %120 = vmatprep.subr.bf16.mxu0 0
  %121 = vmatpush2.bf16.msra.mxu0 0
  %122 = vmatprep.subr.bf16.mxu0 0
  %123 = vmatpush2.bf16.msra.mxu0 0
  %124 = vmatprep.subr.bf16.mxu0 0
  %125 = vmatpush2.bf16.msra.mxu0 0
  %126 = vmatprep.subr.bf16.mxu0 0
  %127 = vmatpush2.bf16.msra.mxu0 0
  %128 = vmatprep.mubr.bf16.mxu0 0
  %129 = vmatmul.mubr.bf16.gmra.mxu0 %v46
  %v130 = vpop.f32.mrf.mxu0
  %v131 = vadd.f32 0.0, %v130
  %v132 = vpop.f32.mrf.mxu0
  %v133 = vpop.f32.mrf.mxu0
  %v134 = vadd.f32 0.0, %v133
  %v135 = vpop.f32.mrf.mxu0
  %136 = vdwg.mxu0
  %137 = vst [vmem:[%s2] sm:$0xff] %v131
  %138 = vst [vmem:[%s2 + $0x8] sm:$0xff] %v134
  %v139 = vld [vmem:[%s3] sm:$0xff]
  %v140 = vld [vmem:[%s3 + $0x8] sm:$0xff]
  %141 = vadd.xlane.f32.xlu0 %v131
  %v142 = vpop.xlane.xlu0 %141
  %143 = vadd.xlane.f32.xlu0 %v134
  %v144 = vpop.xlane.xlu0 %143
  %v145 = vadd.f32 %v139, %v142
  %v146 = vadd.f32 %v140, %v144
  %vm147 = vcmask 7168
  %148 = vst.msk [vmem:[%s3] sm:$0xff] %vm147, %v145
  %149 = vst.msk [vmem:[%s3 + $0x8] sm:$0xff] %vm147, %v146
  %v150 = vld [vmem:[%s4] sm:$0xff]
  %v151 = vld [vmem:[%s4 + $0x8] sm:$0xff]
  %v152 = vmul.f32 %v131, %v131
  %v153 = vmul.f32 %v134, %v134
  %154 = vadd.xlane.f32.xlu0 %v152
  %v155 = vpop.xlane.xlu0 %154
  %156 = vadd.xlane.f32.xlu0 %v153
  %v157 = vpop.xlane.xlu0 %156
  %v158 = vadd.f32 %v150, %v155
  %v159 = vadd.f32 %v151, %v157
  %160 = vst.msk [vmem:[%s4] sm:$0xff] %vm147, %v158
  %161 = vst.msk [vmem:[%s4 + $0x8] sm:$0xff] %vm147, %v159
  // Predicated region
  $region14: #{encoder_forward.7} parent=0 // pred_check
    _
  $region15: #{encoder_forward.7} parent=0 // pred_check_branch
    %163 = sbr.rel (0) target = $region17
  $region16: #{encoder_forward.7} parent=0 // pred_region
    _
  $region17: #{encoder_forward.7} parent=0 // pred_fallthru
    _
  // Predicated region
  $region18: #{encoder_forward.7} parent=0 // pred_check
    _
  $region19: #{encoder_forward.7} parent=0 // pred_check_branch
    %165 = sbr.rel (0) target = $region21
  $region20: #{encoder_forward.7} parent=0 // pred_region
    _
  $region21: #{encoder_forward.7} parent=0 // pred_fallthru
    _
  // Predicated region
  $region22: #{encoder_forward.7} parent=0 // pred_check
    _
  $region23: #{encoder_forward.7} parent=0 // pred_check_branch
    %167 = sbr.rel (0) target = $region25
  $region24: #{encoder_forward.7} parent=0 // pred_region
    _
  $region25: #{encoder_forward.7} parent=0 // pred_fallthru
    _
  // Predicated region
  $region26: #{encoder_forward.7} parent=0 // pred_check
    _
  $region27: #{encoder_forward.7} parent=0 // pred_check_branch
    %169 = sbr.rel (0) target = $region29
  $region28: #{encoder_forward.7} parent=0 // pred_region
    _
  $region29: #{encoder_forward.7} parent=0 // pred_fallthru
    _
  // Predicated region
  $region30: #{encoder_forward.7} parent=0 // pred_check
    _
  $region31: #{encoder_forward.7} parent=0 // pred_check_branch
    %171 = sbr.rel (0) target = $region33
  $region32: #{encoder_forward.7} parent=0 // pred_region
    _
  $region33: #{encoder_forward.7} parent=0 // pred_fallthru
    _
  // Predicated region
  $region34: #{encoder_forward.7} parent=0 // pred_check
    _
  $region35: #{encoder_forward.7} parent=0 // pred_check_branch
    %173 = sbr.rel (0) target = $region37
  $region36: #{encoder_forward.7} parent=0 // pred_region
    _
  $region37: #{encoder_forward.7} parent=0 // pred_fallthru
    _

// kernel: encoder_forward.9
$region0: #{encoder_forward.9}
  #allocation0 [shape = 'u32[]', space=smem, size = 0x4, offset = 0x4, fixed_abs, tag = 'smem constant byte address 0x4 - core index']
  #allocation1 [shape = 'u32[144,128]{1,0:T(1,128)}', space=vmem, size = 0x12000, scoped, tag = 'internal scratch']
  %s0 = inlined_call_operand.vmem [shape: bf16[2,256], index: 0, kind: input, shape index: {}]
  %s1 = inlined_call_operand.vmem [shape: bf16[256,16], index: 1, kind: input, shape index: {}]
  %s2 = inlined_call_operand.vmem [shape: f32[1,16], index: 2, kind: input, shape index: {}]
  %s3 = inlined_call_operand.vmem [shape: f32[2,16], index: 3, kind: output, shape index: {}]
  %s4 = sld [smem:[#allocation0]]
  $region26: #{encoder_forward.9} parent=0
    _
  %s6 = ssub.s32 1, %s4
  %s7 = scalar_select 0, %s6, %s4
  // Predicated region
  $region2: #{encoder_forward.9} parent=0 // pred_check
    _
  $region3: #{encoder_forward.9} parent=0 // pred_check_branch
    %9 = sbr.rel (0) target = $region5
  $region4: #{encoder_forward.9} parent=0 // pred_region
    _
  $region5: #{encoder_forward.9} parent=0 // pred_fallthru
    _
  // Predicated region
  $region6: #{encoder_forward.9} parent=0 // pred_check
    _
  $region7: #{encoder_forward.9} parent=0 // pred_check_branch
    %11 = sbr.rel (0) target = $region9
  $region8: #{encoder_forward.9} parent=0 // pred_region
    _
  $region9: #{encoder_forward.9} parent=0 // pred_fallthru
    _
  // Predicated region
  $region10: #{encoder_forward.9} parent=0 // pred_check
    _
  $region11: #{encoder_forward.9} parent=0 // pred_check_branch
    %13 = sbr.rel (0) target = $region13
  $region12: #{encoder_forward.9} parent=0 // pred_region
    _
  $region13: #{encoder_forward.9} parent=0 // pred_fallthru
    _
  %p15 = scmp.eq.s32.totalorder 0, 0
  // Predicated region
  $region14: #{encoder_forward.9} parent=0 // pred_check
    %p16 = pneg %p15
  $region15: #{encoder_forward.9} parent=0 // pred_check_branch
    %18 = sbr.rel (%p16) target = $region17
  $region16: #{encoder_forward.9} parent=0 // pred_region
    %v19 = vld [vmem:[%s2] sm:$0x1]
    %v21 = vlaneseq
    %v22 = vshrl.u32 %v21, 7
    %v23 = vsub.s32 0, %v22
    %v24 = vrot.slane %v19, %v23
    %vm26 = vcmask 123904
    %27 = vst.msk [vmem:[%s3] sm:$0x3] %vm26, %v24
  $region17: #{encoder_forward.9} parent=0 // pred_fallthru
    _
  %v28 = vld [vmem:[%s3] sm:$0x3]
  %v29 = vld [vmem:[%s0] sm:$0x3]
  %v30 = vld [vmem:[%s1] sm:$0xf]
  %v31 = vld [vmem:[%s1 + $0x4] sm:$0xf]
  %v32 = vld [vmem:[%s1 + $0x8] sm:$0xf]
  %v33 = vld [vmem:[%s1 + $0xc] sm:$0xf]
  %v34 = vld [vmem:[%s1 + $0x10] sm:$0xf]
  %v35 = vld [vmem:[%s1 + $0x14] sm:$0xf]
  %v36 = vld [vmem:[%s1 + $0x18] sm:$0xf]
  %v37 = vld [vmem:[%s1 + $0x1c] sm:$0xf]
  %v38 = vld [vmem:[%s1 + $0x20] sm:$0xf]
  %v39 = vld [vmem:[%s1 + $0x24] sm:$0xf]
  %v40 = vld [vmem:[%s1 + $0x28] sm:$0xf]
  %v41 = vld [vmem:[%s1 + $0x2c] sm:$0xf]
  %v42 = vld [vmem:[%s1 + $0x30] sm:$0xf]
  %v43 = vld [vmem:[%s1 + $0x34] sm:$0xf]
  %v44 = vld [vmem:[%s1 + $0x38] sm:$0xf]
  %v45 = vld [vmem:[%s1 + $0x3c] sm:$0xf]
  %v46 = vld [vmem:[%s1 + $0x40] sm:$0xf]
  %v47 = vld [vmem:[%s1 + $0x44] sm:$0xf]
  %v48 = vld [vmem:[%s1 + $0x48] sm:$0xf]
  %v49 = vld [vmem:[%s1 + $0x4c] sm:$0xf]
  %v50 = vld [vmem:[%s1 + $0x50] sm:$0xf]
  %v51 = vld [vmem:[%s1 + $0x54] sm:$0xf]
  %v52 = vld [vmem:[%s1 + $0x58] sm:$0xf]
  %v53 = vld [vmem:[%s1 + $0x5c] sm:$0xf]
  %v54 = vld [vmem:[%s1 + $0x60] sm:$0xf]
  %v55 = vld [vmem:[%s1 + $0x64] sm:$0xf]
  %v56 = vld [vmem:[%s1 + $0x68] sm:$0xf]
  %v57 = vld [vmem:[%s1 + $0x6c] sm:$0xf]
  %v58 = vld [vmem:[%s1 + $0x70] sm:$0xf]
  %v59 = vld [vmem:[%s1 + $0x74] sm:$0xf]
  %v60 = vld [vmem:[%s1 + $0x78] sm:$0xf]
  %v61 = vld [vmem:[%s1 + $0x7c] sm:$0xf]
  %v64 = vunpack.c.l.s4 1966171168
  %v65 = vunpack.c.0.s8 %v64
  %v66 = vlaneseq
  %v67 = vshrl.u32 %v66, 7
  %v68 = vsub.s32 %v65, %v67
  %v69 = vrot.slane %v29, %v68
  %v70 = vcombine.high %v69, %v69
  %v72 = vunpack.c.l.s4 1966171168
  %v73 = vunpack.c.0.s8 %v72
  %v74 = vlaneseq
  %v75 = vshrl.u32 %v74, 7
  %v76 = vsub.s32 %v73, %v75
  %v77 = vrot.slane %v69, %v76
  %v79 = vunpack.c.l.s4 1966171168
  %v80 = vunpack.c.0.s8 %v79
  %v81 = vlaneseq
  %v82 = vshrl.u32 %v81, 7
  %v83 = vsub.s32 %v80, %v82
  %v84 = vrot.slane %v70, %v83
  %v119 = vunpack.c.l.b16 %v30
  %v120 = vunpack.c.l.b16 %v31
  %v121 = vunpack.c.l.b16 %v32
  %v122 = vunpack.c.l.b16 %v33
  %v123 = vunpack.c.l.b16 %v34
  %v124 = vunpack.c.l.b16 %v35
  %v125 = vunpack.c.l.b16 %v36
  %v126 = vunpack.c.l.b16 %v37
  %v127 = vunpack.c.l.b16 %v38
  %v128 = vunpack.c.l.b16 %v39
  %v129 = vunpack.c.l.b16 %v40
  %v130 = vunpack.c.l.b16 %v41
  %v131 = vunpack.c.l.b16 %v42
  %v132 = vunpack.c.l.b16 %v43
  %v133 = vunpack.c.l.b16 %v44
  %v134 = vunpack.c.l.b16 %v45
  %v135 = vunpack.c.l.b16 %v46
  %v136 = vunpack.c.l.b16 %v47
  %v137 = vunpack.c.l.b16 %v48
  %v138 = vunpack.c.l.b16 %v49
  %v139 = vunpack.c.l.b16 %v50
  %v140 = vunpack.c.l.b16 %v51
  %v141 = vunpack.c.l.b16 %v52
  %v142 = vunpack.c.l.b16 %v53
  %v143 = vunpack.c.l.b16 %v54
  %v144 = vunpack.c.l.b16 %v55
  %v145 = vunpack.c.l.b16 %v56
  %v146 = vunpack.c.l.b16 %v57
  %v147 = vunpack.c.l.b16 %v58
  %v148 = vunpack.c.l.b16 %v59
  %v149 = vunpack.c.l.b16 %v60
  %v150 = vunpack.c.l.b16 %v61
  %v151 = vpack.c.b16 %v120, %v119
  %v152 = vpack.c.b16 %v122, %v121
  %v153 = vpack.c.b16 %v124, %v123
  %v154 = vpack.c.b16 %v126, %v125
  %v155 = vpack.c.b16 %v128, %v127
  %v156 = vpack.c.b16 %v130, %v129
  %v157 = vpack.c.b16 %v132, %v131
  %v158 = vpack.c.b16 %v134, %v133
  %v159 = vpack.c.b16 %v136, %v135
  %v160 = vpack.c.b16 %v138, %v137
  %v161 = vpack.c.b16 %v140, %v139
  %v162 = vpack.c.b16 %v142, %v141
  %v163 = vpack.c.b16 %v144, %v143
  %v164 = vpack.c.b16 %v146, %v145
  %v165 = vpack.c.b16 %v148, %v147
  %v166 = vpack.c.b16 %v150, %v149
  %183 = vmatprep.subr.bf16.mxu0 0
  %184 = vmatpush1.bf16.msra.mxu0 %v158
  %185 = vmatprep.subr.bf16.mxu0 0
  %186 = vmatpush1.bf16.msra.mxu0 %v157
  %187 = vmatprep.subr.bf16.mxu0 0
  %188 = vmatpush1.bf16.msra.mxu0 %v156
  %189 = vmatprep.subr.bf16.mxu0 0
  %190 = vmatpush1.bf16.msra.mxu0 %v155
  %191 = vmatprep.subr.bf16.mxu0 0
  %192 = vmatpush1.bf16.msra.mxu0 %v154
  %193 = vmatprep.subr.bf16.mxu0 0
  %194 = vmatpush1.bf16.msra.mxu0 %v153
  %195 = vmatprep.subr.bf16.mxu0 0
  %196 = vmatpush1.bf16.msra.mxu0 %v152
  %197 = vmatprep.subr.bf16.mxu0 0
  %198 = vmatpush1.bf16.msra.mxu0 %v151
  %199 = vmatprep.subr.bf16.mxu0 0
  %200 = vmatpush2.bf16.msra.mxu0 %v166
  %201 = vmatprep.subr.bf16.mxu0 0
  %202 = vmatpush2.bf16.msra.mxu0 %v165
  %203 = vmatprep.subr.bf16.mxu0 0
  %204 = vmatpush2.bf16.msra.mxu0 %v164
  %205 = vmatprep.subr.bf16.mxu0 0
  %206 = vmatpush2.bf16.msra.mxu0 %v163
  %207 = vmatprep.subr.bf16.mxu0 0
  %208 = vmatpush2.bf16.msra.mxu0 %v162
  %209 = vmatprep.subr.bf16.mxu0 0
  %210 = vmatpush2.bf16.msra.mxu0 %v161
  %211 = vmatprep.subr.bf16.mxu0 0
  %212 = vmatpush2.bf16.msra.mxu0 %v160
  %213 = vmatprep.subr.bf16.mxu0 0
  %214 = vmatpush2.bf16.msra.mxu0 %v159
  %215 = vmatprep.mubr.bf16.mxu0 %v84
  %216 = vmatmul.mubr.bf16.gmra.mxu0 %v77
  %v217 = vpop.f32.mrf.mxu0
  %v218 = vadd.f32 0.0, %v217
  %v219 = vpop.f32.mrf.mxu0
  %v220 = vpop.f32.mrf.mxu0
  %v221 = vpop.f32.mrf.mxu0
  %222 = vdwg.mxu0
  %v223 = vadd.f32 %v28, %v218
  %vm224 = vcmask 123904
  %225 = vst.msk [vmem:[%s3] sm:$0x3] %vm224, %v223
  // Predicated region
  $region18: #{encoder_forward.9} parent=0 // pred_check
    _
  $region19: #{encoder_forward.9} parent=0 // pred_check_branch
    %227 = sbr.rel (0) target = $region21
  $region20: #{encoder_forward.9} parent=0 // pred_region
    _
  $region21: #{encoder_forward.9} parent=0 // pred_fallthru
    _
  // Predicated region
  $region22: #{encoder_forward.9} parent=0 // pred_check
    _
  $region23: #{encoder_forward.9} parent=0 // pred_check_branch
    %229 = sbr.rel (0) target = $region25
  $region24: #{encoder_forward.9} parent=0 // pred_region
    _
  $region25: #{encoder_forward.9} parent=0 // pred_fallthru
    _

</llo_original>
